<compile_context>
chip_gen: v7x
topology: tpu7x:2x2x1
jax: 0.10.0
libtpu: 0.0.40
codegen_flags: <defaults>
</compile_context>

<pallas_src>
import functools

import jax
import jax.numpy as jnp
from jax import lax
from jax.experimental import pallas as pl
from jax.experimental.pallas import tpu as pltpu


# ----------------------------------------------------------------------------
# VMEM budget helper: never request more scoped VMEM than the chip has
# (v7x has only 64 MiB/TC; v5e/v6e get ~10% headroom below 128 MiB).
# ----------------------------------------------------------------------------
@functools.lru_cache(maxsize=None)
def _vmem_budget_bytes():
    try:
        cap = int(pltpu.get_tpu_info().vmem_capacity_bytes)
    except Exception:
        cap = 64 << 20          # conservative fallback (v7x-sized)
    return int(0.9 * cap)


# ----------------------------------------------------------------------------
# Kernel 0: per-row squared norms (computed once, reused by every dist tile)
# ----------------------------------------------------------------------------
def _sq_norm_kernel(x_ref, out_ref, *, as_row):
    x = x_ref[...].astype(jnp.float32)                          # (tr, D)
    sq = x * x
    if as_row:
        # (1, tr) row via a ones-matvec: no (tr,1)->(1,tr) relayout needed.
        ones_row = jnp.ones((1, x.shape[-1]), jnp.float32)
        out_ref[...] = lax.dot_general(ones_row, sq, (((1,), (1,)), ((), ())),
                                       preferred_element_type=jnp.float32)
    else:
        out_ref[...] = jnp.sum(sq, axis=-1, keepdims=True)      # (tr, 1)


def _squared_norms(x, *, as_row, tile=512):
    R, D = x.shape
    tr = R if R <= tile else tile
    grid = (pl.cdiv(R, tr),)
    out_shape = (1, R) if as_row else (R, 1)
    out_block = (1, tr) if as_row else (tr, 1)
    out_map = (lambda i: (0, i)) if as_row else (lambda i: (i, 0))
    return pl.pallas_call(
        functools.partial(_sq_norm_kernel, as_row=as_row),
        out_shape=jax.ShapeDtypeStruct(out_shape, jnp.float32),
        grid_spec=pltpu.PrefetchScalarGridSpec(
            num_scalar_prefetch=0,
            grid=grid,
            in_specs=[pl.BlockSpec((tr, D), lambda i: (i, 0))],
            out_specs=pl.BlockSpec(out_block, out_map),
        ),
        compiler_params=pltpu.CompilerParams(
            dimension_semantics=("parallel",),
            vmem_limit_bytes=_vmem_budget_bytes()),
    )(x)


# ----------------------------------------------------------------------------
# Kernel 1: pairwise Euclidean distance matrix (tiled, MXU hot path)
# ----------------------------------------------------------------------------
def _pairwise_dist_kernel(xsq_ref, ysq_ref, src_ref, tgt_ref, dist_ref, *,
                          use_bf16):
    xx = xsq_ref[...]                                           # (tm, 1)
    yy = ysq_ref[...]                                           # (1, tn)

    if use_bf16:
        # Optional bf16 MXU path (f32 accumulation).  Off by default because
        # the Gram identity is cancellation-sensitive.
        xm = src_ref[...].astype(jnp.bfloat16)
        ym = tgt_ref[...].astype(jnp.bfloat16)
    else:
        xm = src_ref[...].astype(jnp.float32)
        ym = tgt_ref[...].astype(jnp.float32)

    # Contract the D axis of both operands directly: no materialized y.T.
    xy = lax.dot_general(xm, ym, (((1,), (1,)), ((), ())),
                         preferred_element_type=jnp.float32)    # (tm, tn)

    d2 = xx + yy - 2.0 * xy
    dist_ref[...] = jnp.sqrt(jnp.maximum(d2, 0.0))


def pairwise_distance(src, tgt, *, tile_m=512, tile_n=512, use_bf16=False):
    """Tiled pairwise distance: grid=(cdiv(N,tm), cdiv(M,tn)), both parallel.

    512x512 output tiles: the kernel is HBM-store-bound for small D, and the
    larger tile amortizes per-grid-step overhead; squared norms are hoisted
    out of the (i, j) loop and arrive as (tm,1)/(1,tn) side inputs.
    """
    N, D = src.shape
    M, _ = tgt.shape
    src_sq = _squared_norms(src, as_row=False)                  # (N, 1)
    tgt_sq = _squared_norms(tgt, as_row=True)                   # (1, M)

    tm = N if N <= tile_m else tile_m
    tn = M if M <= tile_n else tile_n
    grid = (pl.cdiv(N, tm), pl.cdiv(M, tn))

    # TODO(synk): for very large D, add a third "arbitrary" grid axis over D
    # with an f32 accumulator scratch to keep (tm,D)/(tn,D) blocks bounded.
    kernel = functools.partial(_pairwise_dist_kernel, use_bf16=use_bf16)
    return pl.pallas_call(
        kernel,
        out_shape=jax.ShapeDtypeStruct((N, M), jnp.float32),
        grid_spec=pltpu.PrefetchScalarGridSpec(
            num_scalar_prefetch=0,
            grid=grid,
            in_specs=[
                pl.BlockSpec((tm, 1), lambda i, j: (i, 0)),
                pl.BlockSpec((1, tn), lambda i, j: (0, j)),
                pl.BlockSpec((tm, D), lambda i, j: (i, 0)),
                pl.BlockSpec((tn, D), lambda i, j: (j, 0)),
            ],
            out_specs=pl.BlockSpec((tm, tn), lambda i, j: (i, j)),
        ),
        compiler_params=pltpu.CompilerParams(
            dimension_semantics=("parallel", "parallel"),
            vmem_limit_bytes=_vmem_budget_bytes()),
    )(src_sq, tgt_sq, src, tgt)


# ----------------------------------------------------------------------------
# Kernel 2: OT loss (normalize marginals + Sinkhorn + <P, C> without P)
# ----------------------------------------------------------------------------
_MAX_SINKHORN_ITERS = 200
_CHECK_EVERY = 5          # statically unrolled inner iterations per check
_SINKHORN_TOL = 1e-6


def _ot_loss_kernel(a_ref, b_ref, c_hbm_ref, loss_ref,
                    c_vmem, k_ref, kt_ref, copy_sem):
    # Single-buffered copy of the full cost matrix into VMEM (grid=(1,), so
    # the default 2-deep BlockSpec pipeline would waste a whole extra N*M*4).
    cp = pltpu.make_async_copy(c_hbm_ref, c_vmem, copy_sem)
    cp.start()
    cp.wait()

    # Normalize the marginals (matches `dist /= dist.sum()`).
    a = a_ref[...].astype(jnp.float32)                          # (1, N)
    b = b_ref[...].astype(jnp.float32)                          # (1, M)
    a = a * pl.reciprocal(jnp.sum(a), approx=False)
    b = b * pl.reciprocal(jnp.sum(b), approx=False)

    c = c_vmem[...]                                             # (N, M) f32
    eps = 0.02 * jnp.max(c) + 1e-12                             # regularization
    inv_eps = pl.reciprocal(eps, approx=False)

    # K in bf16 (halves per-iteration VMEM load bytes and K's footprint),
    # plus a hoisted K^T so neither matvec needs a per-iteration transpose.
    # TODO(synk): log-domain (stabilized) Sinkhorn would be more robust where
    # exp(-C/eps) underflows; kept in plain exp-domain here.
    k_f32 = jnp.exp(-c * inv_eps)                               # (N, M)
    k_ref[...] = k_f32.astype(jnp.bfloat16)                     # (N, M) bf16
    kt_ref[...] = k_f32.T.astype(jnp.bfloat16)                  # (M, N) bf16

    tiny = 1e-30

    def cond(carry):
        _, _, it, err = carry
        return jnp.logical_and(it < _MAX_SINKHORN_ITERS, err > _SINKHORN_TOL)

    def body(carry):
        u, v, it, _ = carry
        v_prev = v
        for _ in range(_CHECK_EVERY):                           # static unroll
            # Kv[n] = sum_m K[n,m] v[m]  -> (1, N); bf16 operands, f32 accum.
            Kv = lax.dot_general(v.astype(jnp.bfloat16), kt_ref[...],
                                 (((1,), (0,)), ((), ())),
                                 preferred_element_type=jnp.float32)
            # Exact reciprocal: approx EUP error (~1e-3) would keep the
            # relative-change criterion above tol forever; exact is ~free
            # because the loop is K-load bound, and lets the early-exit fire.
            u = a * pl.reciprocal(Kv + tiny, approx=False)
            # KTu[m] = sum_n K[n,m] u[n] -> (1, M).
            KTu = lax.dot_general(u.astype(jnp.bfloat16), k_ref[...],
                                  (((1,), (0,)), ((), ())),
                                  preferred_element_type=jnp.float32)
            v = b * pl.reciprocal(KTu + tiny, approx=False)
        err = jnp.max(jnp.abs(v - v_prev)) / (jnp.max(jnp.abs(v)) + tiny)
        return (u, v, it + _CHECK_EVERY, err)

    u0 = jnp.ones_like(a)
    v0 = jnp.ones_like(b)
    u, v, _, _ = lax.while_loop(
        cond, body, (u0, v0, jnp.int32(0), jnp.float32(jnp.inf)))

    # loss = sum_{n,m} u[n] K[n,m] C[n,m] v[m].  P is never materialized and
    # K*C is recomputed here in f32 (one fused exp+mul pass) so no f32 copy of
    # K has to stay live across the whole Sinkhorn loop.
    c2 = c_vmem[...]
    kc = jnp.exp(-c2 * inv_eps) * c2                            # (N, M) f32
    kc_u = lax.dot_general(u, kc, (((1,), (0,)), ((), ())),
                           preferred_element_type=jnp.float32)  # (1, M)
    loss_ref[...] = jnp.sum(kc_u * v).reshape(1, 1)


def ot_loss_kernel_call(a_row, b_row, cost):
    N, M = cost.shape
    # Peak VMEM ~ C(f32) + K(bf16) + K^T(bf16) + epilogue temp ~= 12*N*M bytes.
    # TODO(synk): for N*M beyond what fits in VMEM, stream C tiles from HBM
    # (or fuse kernel 1 into this kernel so C never round-trips through HBM).
    # TODO(synk): if many (source,target) pairs are scored, add a leading
    # parallel batch grid axis so both v7x TensorCores are used.
    return pl.pallas_call(
        _ot_loss_kernel,
        out_shape=jax.ShapeDtypeStruct((1, 1), jnp.float32),
        grid_spec=pltpu.PrefetchScalarGridSpec(
            num_scalar_prefetch=0,
            grid=(1,),
            in_specs=[
                pl.BlockSpec((1, N), lambda i: (0, 0)),
                pl.BlockSpec((1, M), lambda i: (0, 0)),
                pl.BlockSpec(memory_space=pl.ANY),   # cost stays in HBM; 1 DMA
            ],
            out_specs=pl.BlockSpec((1, 1), lambda i: (0, 0)),
            scratch_shapes=[
                pltpu.VMEM((N, M), jnp.float32),     # C
                pltpu.VMEM((N, M), jnp.bfloat16),    # K
                pltpu.VMEM((M, N), jnp.bfloat16),    # K^T
                pltpu.SemaphoreType.DMA(()),
            ],
        ),
        compiler_params=pltpu.CompilerParams(
            dimension_semantics=("arbitrary",),
            vmem_limit_bytes=_vmem_budget_bytes()),
    )(a_row, b_row, cost)


# ----------------------------------------------------------------------------
# Wrapper mirroring OTLoss.forward(...)
# ----------------------------------------------------------------------------
def ot_loss(source_distribution, target_distribution,
            source_samples, target_samples, *, use_bf16_matmul=False):
    # Glue reshapes only; all compute happens inside the Pallas kernels.
    dist = pairwise_distance(source_samples, target_samples,
                             use_bf16=use_bf16_matmul)
    a_row = source_distribution.reshape(1, -1).astype(jnp.float32)
    b_row = target_distribution.reshape(1, -1).astype(jnp.float32)
    loss = ot_loss_kernel_call(a_row, b_row, dist)
    return loss[0, 0]


if __name__ == "__main__":
    key = jax.random.PRNGKey(0)
    k1, k2, k3, k4, k5, k6 = jax.random.split(key, 6)

    # Small synthetic shapes consistent with the module's forward.
    N, M, D = 8, 8, 32
    source_samples = jax.random.normal(k1, (N, D), dtype=jnp.float32)
    target_samples = jax.random.normal(k2, (M, D), dtype=jnp.float32)
    # positive (unnormalized) histograms, like the PyTorch module expects
    source_distribution = jax.random.uniform(k3, (N,), dtype=jnp.float32) + 0.1
    target_distribution = jax.random.uniform(k4, (M,), dtype=jnp.float32) + 0.1

    loss = ot_loss(source_distribution, target_distribution,
                   source_samples, target_samples)
    loss = jax.block_until_ready(loss)

    # sanity 1: distance kernel matches a plain-JAX reference (single tile)
    dist_ref = jnp.linalg.norm(
        source_samples[:, None, :] - target_samples[None, :, :], axis=-1)
    dist_krn = pairwise_distance(source_samples, target_samples)
    assert jnp.allclose(dist_krn, dist_ref, atol=1e-3), "distance mismatch"
    assert jnp.isfinite(loss), "non-finite OT loss"
    assert loss >= 0.0, "negative OT loss"

    # sanity 2: exercise the tiled / partial-block path of the distance kernel
    Nb, Mb, Db = 640, 520, 48
    xs = jax.random.normal(k5, (Nb, Db), dtype=jnp.float32)
    ys = jax.random.normal(k6, (Mb, Db), dtype=jnp.float32)
    dist_big = jax.block_until_ready(pairwise_distance(xs, ys))
    ref_big = jnp.linalg.norm(xs[:, None, :] - ys[None, :, :], axis=-1)
    assert dist_big.shape == (Nb, Mb)
    assert jnp.allclose(dist_big, ref_big, atol=2e-3), "tiled distance mismatch"

    print("KERNEL_OK")
</pallas_src>

<mosaic_0001>
module attributes {stable_mosaic.version = 11 : i64} {
  func.func @_sq_norm_kernel(%arg0: i32, %arg1: memref<8x32xf32, #tpu.memory_space<vmem>>, %arg2: memref<8x1xf32, #tpu.memory_space<vmem>>) attributes {dimension_semantics = [#tpu.dimension_semantics<parallel>], iteration_bounds = array<i64: 1>, scalar_prefetch = 0 : i64, scratch_operands = 0 : i64, tpu.core_type = #tpu.core_type<tc>, window_params = [{transform_indices = @transform_0, window_bounds = array<i64: 8, 32>}, {transform_indices = @transform_1, window_bounds = array<i64: 8, 1>}]} {
    %c0 = arith.constant 0 : index
    %c0_0 = arith.constant 0 : index
    %0 = vector.load %arg1[%c0, %c0_0] : memref<8x32xf32, #tpu.memory_space<vmem>>, vector<8x32xf32>
    %1 = arith.mulf %0, %0 : vector<8x32xf32>
    %cst = arith.constant dense<0.000000e+00> : vector<8xf32>
    %2 = vector.multi_reduction <add>, %1, %cst [1] : vector<8x32xf32> to vector<8xf32>
    %3 = vector.shape_cast %2 : vector<8xf32> to vector<8x1xf32>
    %c0_1 = arith.constant 0 : index
    %c0_2 = arith.constant 0 : index
    %4 = vector.load %arg2[%c0_1, %c0_2] : memref<8x1xf32, #tpu.memory_space<vmem>>, vector<8x1xf32>
    tpu.vector_store %arg2[%c0_1, %c0_2], %3 {strides = array<i32>} : memref<8x1xf32, #tpu.memory_space<vmem>>, vector<8x1xf32>,
    return
  }
  func.func @transform_0(%arg0: i32) -> (i32, i32) {
    %c0_i32 = arith.constant 0 : i32
    %c0_i32_0 = arith.constant 0 : i32
    return %arg0, %c0_i32 : i32, i32
  }
  func.func @transform_1(%arg0: i32) -> (i32, i32) {
    %c0_i32 = arith.constant 0 : i32
    %c0_i32_0 = arith.constant 0 : i32
    return %arg0, %c0_i32 : i32, i32
  }
}

</mosaic_0001>

<llo_original>
// kernel: tpu_custom_call.1
$region0: #{tpu_custom_call.1}
  #allocation0 [shape = 'u32[]', space=smem, size = 0x4, offset = 0x4, fixed_abs, tag = 'smem constant byte address 0x4 - core index']
  #allocation1 [shape = 'u32[144,128]{1,0:T(1,128)}', space=vmem, size = 0x12000, scoped, tag = 'internal scratch']
  %s0 = inlined_call_operand.hbm [shape: f32[8,32], index: 0, kind: input, shape index: {}]
  %s1 = inlined_call_operand.vmem [shape: f32[8,1], index: 1, kind: output, shape index: {}]
  %s2 = sld [smem:[#allocation0]]
  $region18: #{tpu_custom_call.1} parent=0
    _
  %s4 = ssub.s32 1, %s2
  %s5 = scalar_select 0, %s4, %s2
  $region1: #{tpu_custom_call.1} parent=0
    #allocation2 [shape = 'u8[4096]{0}', space=vmem, size = 0x1000, scoped, tag = 'input window, operand 0, single buffered']
    #allocation3 [shape = 's32[1]{0}', space=sflag, size = 0x4, scoped, tag = 'scoped memory for tpu_custom_call.1']
    %6 = vsyncpa [#allocation3], 0
    // Predicated region
    $region2: #{tpu_custom_call.1} parent=1 // pred_check
      _
    $region3: #{tpu_custom_call.1} parent=1 // pred_check_branch
      %8 = sbr.rel (0) target = $region5
    $region4: #{tpu_custom_call.1} parent=1 // pred_region
      %s10 = ssub.s32 128, 128
      %11 = vsyncadd [#allocation3], %s10
      %s13 = sshll.u32 [#allocation2], 4
      %s14 = int_to_ptr.vmem [resolvable:$true] %s13
      %16 = dma.hbm_to_vmem [thread:$0]  %s0, 128, %s14, [#allocation3]
    $region5: #{tpu_custom_call.1} parent=1 // pred_fallthru
      _
    // Predicated region
    $region6: #{tpu_custom_call.1} parent=1 // pred_check
      _
    $region7: #{tpu_custom_call.1} parent=1 // pred_check_branch
      %18 = sbr.rel (0) target = $region9
    $region8: #{tpu_custom_call.1} parent=1 // pred_region
      %19 = dma.done [#allocation3], 128
    $region9: #{tpu_custom_call.1} parent=1 // pred_fallthru
      _
    %v20 = vld [vmem:[#allocation2] sm:$0xff]
    %v21 = vmul.f32 %v20, %v20
    %vm22 = vcmask 261120
    %v23 = vsel %vm22, %v21, 0.0
    %24 = vadd.xlane.f32.xlu0 %v23
    %v25 = vpop.xlane.xlu0 %24
    %vm26 = vcmask 7168
    %27 = vst.msk [vmem:[%s1] sm:$0xff] %vm26, %v25
    // Predicated region
    $region10: #{tpu_custom_call.1} parent=1 // pred_check
      _
    $region11: #{tpu_custom_call.1} parent=1 // pred_check_branch
      %29 = sbr.rel (0) target = $region13
    $region12: #{tpu_custom_call.1} parent=1 // pred_region
      _
    $region13: #{tpu_custom_call.1} parent=1 // pred_fallthru
      _
    // Predicated region
    $region14: #{tpu_custom_call.1} parent=1 // pred_check
      _
    $region15: #{tpu_custom_call.1} parent=1 // pred_check_branch
      %31 = sbr.rel (0) target = $region17
    $region16: #{tpu_custom_call.1} parent=1 // pred_region
      _
    $region17: #{tpu_custom_call.1} parent=1 // pred_fallthru
      _
    %32 = vsyncpa [#allocation3], 1

</llo_original>
